<compile_context>
chip_gen: v5e
topology: v5e:2x2
jax: 0.10.0
libtpu: 0.0.40
codegen_flags: <defaults>
</compile_context>

<pallas_src>
import functools

import jax
import jax.numpy as jnp
from jax import lax
from jax.experimental import pallas as pl
from jax.experimental.pallas import tpu as pltpu


def _dice_partial_kernel(p_ref, t_ref, inter_ref, den_ref, inter_acc, den_acc,
                         *, total_s, tile_s, acc_w, s_per_split, needs_mask,
                         apply_sigmoid):
    """Streaming per-row partial sums.  Grid = (split, row_tiles, s_per_split)."""
    sp = pl.program_id(0)                    # spatial-range split (megacore)
    s = pl.program_id(2)                     # spatial tile within this split
    n_s = pl.num_programs(2)
    s_glob = sp * s_per_split + s            # global spatial tile index
    n_chunks = tile_s // acc_w
    full_tiles = total_s // tile_s           # tiles containing no tail lanes

    @pl.when(s == 0)
    def _init():
        inter_acc[...] = jnp.zeros_like(inter_acc)
        den_acc[...] = jnp.zeros_like(den_acc)

    def accumulate(mask_tail):
        # Fold the wide (rb, tile_s) tile into narrow (rb, acc_w) partials with
        # lane-aligned chunked adds (pure VPU); single small scratch RMW/step.
        pi = jnp.zeros(inter_acc.shape, jnp.float32)
        pd = jnp.zeros(den_acc.shape, jnp.float32)
        for c in range(n_chunks):
            lo = c * acc_w
            p = p_ref[:, lo:lo + acc_w].astype(jnp.float32)
            t = t_ref[:, lo:lo + acc_w].astype(jnp.float32)
            if apply_sigmoid:
                p = jax.nn.sigmoid(p)        # fused binary-logits path (EUP)
            if mask_tail:
                col = lax.broadcasted_iota(jnp.int32, p.shape, 1) + lo
                remaining = total_s - s_glob * tile_s   # may be <= 0 (padded tile)
                valid = col < remaining
                p = jnp.where(valid, p, 0.0)
                t = jnp.where(valid, t, 0.0)
            pi = pi + p * t
            pd = pd + (p + t)
        inter_acc[...] += pi
        den_acc[...] += pd

    if needs_mask:
        @pl.when(s_glob < full_tiles)
        def _fast():
            accumulate(mask_tail=False)

        @pl.when(s_glob >= full_tiles)
        def _tail():
            accumulate(mask_tail=True)
    else:
        accumulate(mask_tail=False)

    @pl.when(s == n_s - 1)
    def _finalize():
        inter = jnp.sum(inter_acc[...], axis=1, keepdims=True)   # (rb, 1) XLU
        den = jnp.sum(den_acc[...], axis=1, keepdims=True)
        inter_ref[...] = jnp.broadcast_to(inter, inter_ref.shape)
        den_ref[...] = jnp.broadcast_to(den, den_ref.shape)


def dice_coefficient(inputs, targets, *, num_classes, epsilon=1e-5,
                     classwise=False, logits=False, tile_s=32768, row_block=16):
    """Pallas implementation of DiceCoefficient.forward.

    inputs, targets: (B, C, *spatial).  Targets may be passed in a narrow
    dtype (bf16/int8 one-hot); the kernel casts to f32 internally.
    Returns a scalar (classwise=False) or per-class dice of shape (C,).
    """
    apply_sigmoid = False
    if logits:
        if num_classes == 2:
            apply_sigmoid = True            # sigmoid fused into the kernel
            probs = inputs
        else:
            # TODO(synk): fuse softmax over the class axis into the kernel to
            # save a full HBM round trip on the multiclass-logits path.
            probs = jax.nn.softmax(inputs, axis=1)
    else:
        probs = inputs

    # TODO(synk): accept integer labels and synthesize the one-hot in-kernel to
    # eliminate the C-times-expanded target stream entirely.
    B = probs.shape[0]
    C = num_classes
    probs2 = probs.reshape(B * C, -1)
    targets2 = targets.reshape(B * C, -1)
    R, S = probs2.shape

    # Lane tile: multiple of 128, no larger than the rounded-up spatial extent.
    ts = max(128, min(int(tile_s), ((S + 127) // 128) * 128))
    ts = ((ts + 127) // 128) * 128
    # Row tile: sublane-dense multiple of 8 (or exactly R when R is tiny).
    if R <= 8:
        rb = R
    else:
        rb = max(8, (min(int(row_block), R) // 8) * 8)

    row_tiles = pl.cdiv(R, rb)
    num_s_tiles = pl.cdiv(S, ts)
    # Split the spatial range across a leading parallel axis when the row axis
    # alone cannot feed both v7x TensorCores (no cost on 1-TC chips).
    n_split = 2 if (row_tiles == 1 and num_s_tiles >= 2) else 1
    s_per_split = pl.cdiv(num_s_tiles, n_split)
    padded_tiles = n_split * s_per_split
    needs_mask = (S % ts != 0) or (padded_tiles != num_s_tiles)

    # Narrow accumulator lane width (must divide ts; ts is a multiple of 128).
    acc_w = 512
    while ts % acc_w:
        acc_w //= 2

    if padded_tiles != num_s_tiles:
        # Padded spatial tiles are clamped to the last real tile; the kernel's
        # tail mask (remaining <= 0) zeroes their contribution.
        def in_idx(spl, r, s):
            return (r, jnp.minimum(spl * s_per_split + s, num_s_tiles - 1))
    else:
        def in_idx(spl, r, s):
            return (r, spl * s_per_split + s)

    kernel = functools.partial(
        _dice_partial_kernel, total_s=S, tile_s=ts, acc_w=acc_w,
        s_per_split=s_per_split, needs_mask=needs_mask,
        apply_sigmoid=apply_sigmoid)

    # VMEM budget: 2 inputs x 2 pipeline buffers + narrow scratch + outputs.
    in_bytes = rb * ts * jnp.dtype(probs2.dtype).itemsize
    tgt_bytes = rb * ts * jnp.dtype(targets2.dtype).itemsize
    acc_bytes = 2 * rb * acc_w * 4
    out_bytes = 2 * 2 * rb * 128 * 4
    vmem_est = 2 * (in_bytes + tgt_bytes) + acc_bytes + out_bytes
    # Cap well below v7x's 64 MiB/TC; v5e/v6e have more but don't need it here.
    vmem_limit = int(min(48 * 2**20, max(32 * 2**20, 2 * vmem_est)))

    inter_out, den_out = pl.pallas_call(
        kernel,
        out_shape=(jax.ShapeDtypeStruct((n_split, R, 128), jnp.float32),
                   jax.ShapeDtypeStruct((n_split, R, 128), jnp.float32)),
        grid_spec=pltpu.PrefetchScalarGridSpec(
            num_scalar_prefetch=0,
            grid=(n_split, row_tiles, s_per_split),
            in_specs=[
                pl.BlockSpec((rb, ts), in_idx),
                pl.BlockSpec((rb, ts), in_idx),
            ],
            out_specs=[
                pl.BlockSpec((None, rb, 128), lambda spl, r, s: (spl, r, 0)),
                pl.BlockSpec((None, rb, 128), lambda spl, r, s: (spl, r, 0)),
            ],
            scratch_shapes=[
                pltpu.VMEM((rb, acc_w), jnp.float32),   # intersection partial
                pltpu.VMEM((rb, acc_w), jnp.float32),   # sum(p)+sum(t) partial
            ],
        ),
        compiler_params=pltpu.CompilerParams(
            dimension_semantics=("parallel", "parallel", "arbitrary"),
            vmem_limit_bytes=vmem_limit,
        ),
    )(probs2, targets2)

    # Combine per-split partials (tiny) and apply the Dice formula.
    inter = jnp.sum(inter_out[:, :, 0], axis=0)          # (R,)
    den = jnp.sum(den_out[:, :, 0], axis=0)
    dice_per_class = ((2.0 * inter + epsilon) / (den + epsilon)).reshape(B, C)

    if classwise:
        return jnp.mean(dice_per_class, axis=0)          # shape (C,)
    return jnp.mean(dice_per_class)                      # scalar


def _reference_dice(probs, targets, num_classes, epsilon):
    B = probs.shape[0]
    p = probs.reshape(B, num_classes, -1).astype(jnp.float32)
    t = targets.reshape(B, num_classes, -1).astype(jnp.float32)
    inter = jnp.sum(p * t, axis=2)
    den = jnp.sum(p, axis=2) + jnp.sum(t, axis=2)
    return (2.0 * inter + epsilon) / (den + epsilon)


if __name__ == "__main__":
    key = jax.random.PRNGKey(0)
    k1, k2, k3, k4, k5, k6, k7, k8 = jax.random.split(key, 8)

    # --- case 1: B*C multiple of 8, S multiple of 128 (no tail mask) ---------
    B, C, H, W = 2, 4, 16, 16
    logits_in = jax.random.normal(k1, (B, C, H, W), dtype=jnp.float32)
    probs = jax.nn.softmax(logits_in, axis=1)
    labels = jax.random.randint(k2, (B, H, W), 0, C)
    targets = jax.nn.one_hot(labels, C, axis=1, dtype=jnp.float32)

    dice = dice_coefficient(probs, targets, num_classes=C,
                            epsilon=1e-5, classwise=False)
    dice = jax.block_until_ready(dice)
    dice_cw = dice_coefficient(probs, targets, num_classes=C,
                               epsilon=1e-5, classwise=True)
    dice_cw = jax.block_until_ready(dice_cw)

    ref_pc = _reference_dice(probs, targets, C, 1e-5)
    assert jnp.allclose(dice, jnp.mean(ref_pc), atol=1e-5, rtol=1e-5)
    assert jnp.allclose(dice_cw, jnp.mean(ref_pc, axis=0), atol=1e-5, rtol=1e-5)

    # --- case 2: ragged rows (R % 8 != 0) and ragged spatial (S % 128 != 0) --
    B2, C2, H2, W2 = 3, 5, 10, 13
    logits2 = jax.random.normal(k3, (B2, C2, H2, W2), dtype=jnp.float32)
    probs2 = jax.nn.softmax(logits2, axis=1)
    labels2 = jax.random.randint(k4, (B2, H2, W2), 0, C2)
    targets2 = jax.nn.one_hot(labels2, C2, axis=1, dtype=jnp.float32)

    dice2 = dice_coefficient(probs2, targets2, num_classes=C2,
                             epsilon=1e-5, classwise=False)
    dice2 = jax.block_until_ready(dice2)
    ref_pc2 = _reference_dice(probs2, targets2, C2, 1e-5)
    assert jnp.allclose(dice2, jnp.mean(ref_pc2), atol=1e-5, rtol=1e-5)

    # --- case 3: single row tile + multi-tile spatial axis -> exercises the
    #             split ("megacore") axis, clamped padded tiles and tail mask.
    B3, C3, S3 = 1, 3, 2500
    logits3 = jax.random.normal(k5, (B3, C3, S3), dtype=jnp.float32)
    probs3 = jax.nn.softmax(logits3, axis=1)
    labels3 = jax.random.randint(k6, (B3, S3), 0, C3)
    targets3 = jax.nn.one_hot(labels3, C3, axis=1, dtype=jnp.float32)

    dice3 = dice_coefficient(probs3, targets3, num_classes=C3,
                             epsilon=1e-5, classwise=False, tile_s=512)
    dice3 = jax.block_until_ready(dice3)
    ref_pc3 = _reference_dice(probs3, targets3, C3, 1e-5)
    assert jnp.allclose(dice3, jnp.mean(ref_pc3), atol=1e-4, rtol=1e-4)

    # --- case 4: binary logits path (sigmoid fused into the kernel) ----------
    B4, C4, H4, W4 = 2, 2, 16, 16
    logits4 = jax.random.normal(k7, (B4, C4, H4, W4), dtype=jnp.float32)
    labels4 = jax.random.randint(k8, (B4, H4, W4), 0, C4)
    targets4 = jax.nn.one_hot(labels4, C4, axis=1, dtype=jnp.float32)

    dice4 = dice_coefficient(logits4, targets4, num_classes=C4,
                             epsilon=1e-5, classwise=False, logits=True)
    dice4 = jax.block_until_ready(dice4)
    ref_pc4 = _reference_dice(jax.nn.sigmoid(logits4), targets4, C4, 1e-5)
    assert jnp.allclose(dice4, jnp.mean(ref_pc4), atol=1e-5, rtol=1e-5)

    print("KERNEL_OK")
</pallas_src>

<mosaic_0001>
module attributes {stable_mosaic.version = 11 : i64} {
  func.func @_dice_partial_kernel(%arg0: i32, %arg1: i32, %arg2: i32, %arg3: memref<8x256xf32, #tpu.memory_space<vmem>>, %arg4: memref<8x256xf32, #tpu.memory_space<vmem>>, %arg5: memref<1x8x128xf32, #tpu.memory_space<vmem>>, %arg6: memref<1x8x128xf32, #tpu.memory_space<vmem>>, %arg7: memref<8x256xf32, #tpu.memory_space<vmem>>, %arg8: memref<8x256xf32, #tpu.memory_space<vmem>>) attributes {dimension_semantics = [#tpu.dimension_semantics<parallel>, #tpu.dimension_semantics<parallel>, #tpu.dimension_semantics<arbitrary>], iteration_bounds = array<i64: 1, 1, 1>, scalar_prefetch = 0 : i64, scratch_operands = 2 : i64, tpu.core_type = #tpu.core_type<tc>, window_params = [{transform_indices = @transform_0, window_bounds = array<i64: 8, 256>}, {transform_indices = @transform_1, window_bounds = array<i64: 8, 256>}, {transform_indices = @transform_2, window_bounds = array<i64: 1, 8, 128>}, {transform_indices = @transform_3, window_bounds = array<i64: 1, 8, 128>}]} {
    %c0_i32 = arith.constant 0 : i32
    %0 = arith.cmpi eq, %arg2, %c0_i32 : i32
    %1 = arith.extui %0 : i1 to i32
    %c0_i32_0 = arith.constant 0 : i32
    %2 = arith.cmpi ne, %1, %c0_i32_0 : i32
    scf.if %2 {
      %cst_15 = arith.constant 0.000000e+00 : f32
      %20 = vector.broadcast %cst_15 : f32 to vector<8x256xf32>
      %c0_16 = arith.constant 0 : index
      %c0_17 = arith.constant 0 : index
      %21 = vector.load %arg7[%c0_16, %c0_17] : memref<8x256xf32, #tpu.memory_space<vmem>>, vector<8x256xf32>
      tpu.vector_store %arg7[%c0_16, %c0_17], %20 {strides = array<i32>} : memref<8x256xf32, #tpu.memory_space<vmem>>, vector<8x256xf32>,
      %cst_18 = arith.constant 0.000000e+00 : f32
      %22 = vector.broadcast %cst_18 : f32 to vector<8x256xf32>
      %c0_19 = arith.constant 0 : index
      %c0_20 = arith.constant 0 : index
      %23 = vector.load %arg8[%c0_19, %c0_20] : memref<8x256xf32, #tpu.memory_space<vmem>>, vector<8x256xf32>
      tpu.vector_store %arg8[%c0_19, %c0_20], %22 {strides = array<i32>} : memref<8x256xf32, #tpu.memory_space<vmem>>, vector<8x256xf32>,
    } else {
    }
    %cst = arith.constant 0.000000e+00 : f32
    %3 = vector.broadcast %cst : f32 to vector<8x256xf32>
    %cst_1 = arith.constant 0.000000e+00 : f32
    %4 = vector.broadcast %cst_1 : f32 to vector<8x256xf32>
    %c0 = arith.constant 0 : index
    %c0_2 = arith.constant 0 : index
    %5 = vector.load %arg3[%c0, %c0_2] : memref<8x256xf32, #tpu.memory_space<vmem>>, vector<8x256xf32>
    %c0_3 = arith.constant 0 : index
    %c0_4 = arith.constant 0 : index
    %6 = vector.load %arg4[%c0_3, %c0_4] : memref<8x256xf32, #tpu.memory_space<vmem>>, vector<8x256xf32>
    %7 = arith.mulf %5, %6 : vector<8x256xf32>
    %8 = arith.addf %3, %7 : vector<8x256xf32>
    %9 = arith.addf %5, %6 : vector<8x256xf32>
    %10 = arith.addf %4, %9 : vector<8x256xf32>
    %c0_5 = arith.constant 0 : index
    %c0_6 = arith.constant 0 : index
    %11 = vector.load %arg7[%c0_5, %c0_6] : memref<8x256xf32, #tpu.memory_space<vmem>>, vector<8x256xf32>
    %12 = arith.addf %11, %8 : vector<8x256xf32>
    %c0_7 = arith.constant 0 : index
    %c0_8 = arith.constant 0 : index
    %13 = vector.load %arg7[%c0_7, %c0_8] : memref<8x256xf32, #tpu.memory_space<vmem>>, vector<8x256xf32>
    tpu.vector_store %arg7[%c0_7, %c0_8], %12 {strides = array<i32>} : memref<8x256xf32, #tpu.memory_space<vmem>>, vector<8x256xf32>,
    %c0_9 = arith.constant 0 : index
    %c0_10 = arith.constant 0 : index
    %14 = vector.load %arg8[%c0_9, %c0_10] : memref<8x256xf32, #tpu.memory_space<vmem>>, vector<8x256xf32>
    %15 = arith.addf %14, %10 : vector<8x256xf32>
    %c0_11 = arith.constant 0 : index
    %c0_12 = arith.constant 0 : index
    %16 = vector.load %arg8[%c0_11, %c0_12] : memref<8x256xf32, #tpu.memory_space<vmem>>, vector<8x256xf32>
    tpu.vector_store %arg8[%c0_11, %c0_12], %15 {strides = array<i32>} : memref<8x256xf32, #tpu.memory_space<vmem>>, vector<8x256xf32>,
    %c0_i32_13 = arith.constant 0 : i32
    %17 = arith.cmpi eq, %arg2, %c0_i32_13 : i32
    %18 = arith.extui %17 : i1 to i32
    %c0_i32_14 = arith.constant 0 : i32
    %19 = arith.cmpi ne, %18, %c0_i32_14 : i32
    scf.if %19 {
      %c0_15 = arith.constant 0 : index
      %c0_16 = arith.constant 0 : index
      %20 = vector.load %arg7[%c0_15, %c0_16] : memref<8x256xf32, #tpu.memory_space<vmem>>, vector<8x256xf32>
      %cst_17 = arith.constant dense<0.000000e+00> : vector<8xf32>
      %21 = vector.multi_reduction <add>, %20, %cst_17 [1] : vector<8x256xf32> to vector<8xf32>
      %22 = vector.shape_cast %21 : vector<8xf32> to vector<8x1xf32>
      %c0_18 = arith.constant 0 : index
      %c0_19 = arith.constant 0 : index
      %23 = vector.load %arg8[%c0_18, %c0_19] : memref<8x256xf32, #tpu.memory_space<vmem>>, vector<8x256xf32>
      %cst_20 = arith.constant dense<0.000000e+00> : vector<8xf32>
      %24 = vector.multi_reduction <add>, %23, %cst_20 [1] : vector<8x256xf32> to vector<8xf32>
      %25 = vector.shape_cast %24 : vector<8xf32> to vector<8x1xf32>
      %26 = vector.shape_cast %22 : vector<8x1xf32> to vector<8x1xf32>
      %27 = vector.broadcast %26 : vector<8x1xf32> to vector<8x128xf32>
      %c0_21 = arith.constant 0 : index
      %c0_22 = arith.constant 0 : index
      %c0_23 = arith.constant 0 : index
      %28 = vector.load %arg5[%c0_21, %c0_22, %c0_23] : memref<1x8x128xf32, #tpu.memory_space<vmem>>, vector<1x8x128xf32>
      %29 = vector.shape_cast %28 : vector<1x8x128xf32> to vector<8x128xf32>
      %30 = vector.shape_cast %27 : vector<8x128xf32> to vector<1x8x128xf32>
      tpu.vector_store %arg5[%c0_21, %c0_22, %c0_23], %30 {strides = array<i32>} : memref<1x8x128xf32, #tpu.memory_space<vmem>>, vector<1x8x128xf32>,
      %31 = vector.shape_cast %25 : vector<8x1xf32> to vector<8x1xf32>
      %32 = vector.broadcast %31 : vector<8x1xf32> to vector<8x128xf32>
      %c0_24 = arith.constant 0 : index
      %c0_25 = arith.constant 0 : index
      %c0_26 = arith.constant 0 : index
      %33 = vector.load %arg6[%c0_24, %c0_25, %c0_26] : memref<1x8x128xf32, #tpu.memory_space<vmem>>, vector<1x8x128xf32>
      %34 = vector.shape_cast %33 : vector<1x8x128xf32> to vector<8x128xf32>
      %35 = vector.shape_cast %32 : vector<8x128xf32> to vector<1x8x128xf32>
      tpu.vector_store %arg6[%c0_24, %c0_25, %c0_26], %35 {strides = array<i32>} : memref<1x8x128xf32, #tpu.memory_space<vmem>>, vector<1x8x128xf32>,
    } else {
    }
    return
  }
  func.func @transform_0(%arg0: i32, %arg1: i32, %arg2: i32) -> (i32, i32) {
    %c1_i32 = arith.constant 1 : i32
    %0 = arith.muli %arg0, %c1_i32 : i32
    %1 = arith.addi %0, %arg2 : i32
    %c0_i32 = arith.constant 0 : i32
    return %arg1, %1 : i32, i32
  }
  func.func @transform_1(%arg0: i32, %arg1: i32, %arg2: i32) -> (i32, i32) {
    %c1_i32 = arith.constant 1 : i32
    %0 = arith.muli %arg0, %c1_i32 : i32
    %1 = arith.addi %0, %arg2 : i32
    %c0_i32 = arith.constant 0 : i32
    return %arg1, %1 : i32, i32
  }
  func.func @transform_2(%arg0: i32, %arg1: i32, %arg2: i32) -> (i32, i32, i32) {
    %c0_i32 = arith.constant 0 : i32
    %c0_i32_0 = arith.constant 0 : i32
    return %arg0, %arg1, %c0_i32 : i32, i32, i32
  }
  func.func @transform_3(%arg0: i32, %arg1: i32, %arg2: i32) -> (i32, i32, i32) {
    %c0_i32 = arith.constant 0 : i32
    %c0_i32_0 = arith.constant 0 : i32
    return %arg0, %arg1, %c0_i32 : i32, i32, i32
  }
}

</mosaic_0001>

<llo_original>
// kernel: tpu_custom_call.1
$region0: #{tpu_custom_call.1}
  #allocation0 [shape = 'u32[]', space=smem, size = 0x4, offset = 0x4, fixed_abs, tag = 'smem constant byte address 0x4 - core index']
  #allocation1 [shape = 'u32[72,128]{1,0:T(1,128)}', space=vmem, size = 0x9000, scoped, tag = 'internal scratch']
  #allocation2 [shape = 'f32[8,256]{1,0:T(8,128)}', space=vmem, size = 0x2000, scoped, tag = 'scratch operand']
  #allocation3 [shape = 'f32[8,256]{1,0:T(8,128)}', space=vmem, size = 0x2000, scoped, tag = 'scratch operand']
  %s0 = inlined_call_operand.hbm [shape: f32[8,256], index: 0, kind: input, shape index: {}]
  %s1 = inlined_call_operand.hbm [shape: f32[8,256], index: 1, kind: input, shape index: {}]
  %s2 = inlined_call_operand.hbm [shape: f32[1,8,128], index: 2, kind: output, shape index: {0}]
  %s3 = inlined_call_operand.hbm [shape: f32[1,8,128], index: 3, kind: output, shape index: {1}]
  %4 = xla_tuple %s2, %s3
  %s5 = sld [smem:[#allocation0]]
  $region42: #{tpu_custom_call.1} parent=0
    _
  %s7 = ssub.s32 1, %s5
  %s8 = scalar_select 0, %s7, %s5
  $region1: #{tpu_custom_call.1} parent=0
    #allocation4 [shape = 'u8[8192]{0}', space=vmem, size = 0x2000, scoped, tag = 'input window, operand 0, single buffered']
    #allocation5 [shape = 's32[1]{0}', space=sflag, size = 0x4, scoped, tag = 'scoped memory for tpu_custom_call.1']
    #allocation6 [shape = 's32[1]{0}', space=sflag, size = 0x4, scoped, tag = 'scoped memory for tpu_custom_call.1']
    #allocation7 [shape = 'u8[8192]{0}', space=vmem, size = 0x2000, scoped, tag = 'input window, operand 1, single buffered']
    #allocation8 [shape = 's32[1]{0}', space=sflag, size = 0x4, scoped, tag = 'scoped memory for tpu_custom_call.1']
    #allocation9 [shape = 'u8[4096]{0}', space=vmem, size = 0x1000, scoped, tag = 'output window, operand 0, single buffered']
    #allocation10 [shape = 'u8[4096]{0}', space=vmem, size = 0x1000, scoped, tag = 'output window, operand 1, single buffered']
    #allocation11 [shape = 's32[1]{0}', space=sflag, size = 0x4, scoped, tag = 'scoped memory for tpu_custom_call.1']
    %9 = vsyncpa [#allocation5], 0
    %10 = vsyncpa [#allocation8], 0
    %11 = vsyncpa [#allocation6], 0
    %12 = vsyncpa [#allocation11], 0
    // Predicated region
    $region2: #{tpu_custom_call.1} parent=1 // pred_check
      _
    $region3: #{tpu_custom_call.1} parent=1 // pred_check_branch
      %14 = sbr.rel (0) target = $region5
    $region4: #{tpu_custom_call.1} parent=1 // pred_region
      %s15 = sadd.s32 0, 0
      %s16 = smul.u32 2, %s15
      %18 = vsyncadd [#allocation5], 0
      %s19 = smul.addr %s16, 8
      %s20 = scalar_lea.hbm %s0, %s19
      %s22 = sshll.u32 %s20, 4
      %s23 = int_to_ptr.hbm [resolvable:$true] %s22
      %s24 = sshll.u32 [#allocation4], 4
      %s25 = int_to_ptr.vmem [resolvable:$true] %s24
      %27 = dma.hbm_to_vmem [thread:$0]  %s23, 256, %s25, [#allocation5]
    $region5: #{tpu_custom_call.1} parent=1 // pred_fallthru
      _
    // Predicated region
    $region6: #{tpu_custom_call.1} parent=1 // pred_check
      _
    $region7: #{tpu_custom_call.1} parent=1 // pred_check_branch
      %29 = sbr.rel (0) target = $region9
    $region8: #{tpu_custom_call.1} parent=1 // pred_region
      %s30 = sadd.s32 0, 0
      %s31 = smul.u32 2, %s30
      %33 = vsyncadd [#allocation8], 0
      %s34 = smul.addr %s31, 8
      %s35 = scalar_lea.hbm %s1, %s34
      %s37 = sshll.u32 %s35, 4
      %s38 = int_to_ptr.hbm [resolvable:$true] %s37
      %s39 = sshll.u32 [#allocation7], 4
      %s40 = int_to_ptr.vmem [resolvable:$true] %s39
      %42 = dma.hbm_to_vmem [thread:$0]  %s38, 256, %s40, [#allocation8]
    $region9: #{tpu_custom_call.1} parent=1 // pred_fallthru
      _
    // Predicated region
    $region10: #{tpu_custom_call.1} parent=1 // pred_check
      _
    $region11: #{tpu_custom_call.1} parent=1 // pred_check_branch
      %44 = sbr.rel (0) target = $region13
    $region12: #{tpu_custom_call.1} parent=1 // pred_region
      %46 = dma.done [#allocation5], 256
    $region13: #{tpu_custom_call.1} parent=1 // pred_fallthru
      _
    // Predicated region
    $region14: #{tpu_custom_call.1} parent=1 // pred_check
      _
    $region15: #{tpu_custom_call.1} parent=1 // pred_check_branch
      %48 = sbr.rel (0) target = $region17
    $region16: #{tpu_custom_call.1} parent=1 // pred_region
      %50 = dma.done [#allocation8], 256
    $region17: #{tpu_custom_call.1} parent=1 // pred_fallthru
      _
    %s51 = sadd.s32 0, 0
    %s52 = smul.u32 2, %s51
    %s53 = sadd.s32 0, 0
    %s54 = smul.u32 2, %s53
    %p55 = scmp.eq.s32.totalorder 0, 0
    // Predicated region
    $region18: #{tpu_custom_call.1} parent=1 // pred_check
      %p56 = pneg %p55
    $region19: #{tpu_custom_call.1} parent=1 // pred_check_branch
      %58 = sbr.rel (%p56) target = $region21
    $region20: #{tpu_custom_call.1} parent=1 // pred_region
      %59 = vst [vmem:[#allocation2] sm:$0xff] 0.0
      %60 = vst [vmem:[#allocation2 + $0x8] sm:$0xff] 0.0
      %61 = vst [vmem:[#allocation3] sm:$0xff] 0.0
      %62 = vst [vmem:[#allocation3 + $0x8] sm:$0xff] 0.0
    $region21: #{tpu_custom_call.1} parent=1 // pred_fallthru
      _
    %v63 = vld [vmem:[#allocation4] sm:$0xff]
    %v64 = vld [vmem:[#allocation4 + $0x8] sm:$0xff]
    %v65 = vld [vmem:[#allocation7] sm:$0xff]
    %v66 = vld [vmem:[#allocation7 + $0x8] sm:$0xff]
    %v67 = vmul.f32 %v63, %v65
    %v68 = vmul.f32 %v64, %v66
    %v69 = vadd.f32 %v67, 0.0
    %v70 = vadd.f32 %v68, 0.0
    %v71 = vadd.f32 %v63, %v65
    %v72 = vadd.f32 %v64, %v66
    %v73 = vadd.f32 %v71, 0.0
    %v74 = vadd.f32 %v72, 0.0
    %v75 = vld [vmem:[#allocation2] sm:$0xff]
    %v76 = vld [vmem:[#allocation2 + $0x8] sm:$0xff]
    %v77 = vadd.f32 %v75, %v69
    %v78 = vadd.f32 %v76, %v70
    %79 = vst [vmem:[#allocation2] sm:$0xff] %v77
    %80 = vst [vmem:[#allocation2 + $0x8] sm:$0xff] %v78
    %v81 = vld [vmem:[#allocation3] sm:$0xff]
    %v82 = vld [vmem:[#allocation3 + $0x8] sm:$0xff]
    %v83 = vadd.f32 %v81, %v73
    %v84 = vadd.f32 %v82, %v74
    %85 = vst [vmem:[#allocation3] sm:$0xff] %v83
    %86 = vst [vmem:[#allocation3 + $0x8] sm:$0xff] %v84
    // Predicated region
    $region22: #{tpu_custom_call.1} parent=1 // pred_check
      %p87 = pneg %p55
    $region23: #{tpu_custom_call.1} parent=1 // pred_check_branch
      %89 = sbr.rel (%p87) target = $region25
    $region24: #{tpu_custom_call.1} parent=1 // pred_region
      %v90 = vld [vmem:[#allocation2] sm:$0xff]
      %v91 = vld [vmem:[#allocation2 + $0x8] sm:$0xff]
      %v92 = vadd.f32 %v90, %v91
      %93 = vadd.xlane.f32.xlu0 %v92
      %v94 = vpop.xlane.xlu0 %93
      %v95 = vld [vmem:[#allocation3] sm:$0xff]
      %v96 = vld [vmem:[#allocation3 + $0x8] sm:$0xff]
      %v97 = vadd.f32 %v95, %v96
      %98 = vadd.xlane.f32.xlu0 %v97
      %v99 = vpop.xlane.xlu0 %98
      %100 = vst [vmem:[#allocation9] sm:$0xff] %v94
      %101 = vst [vmem:[#allocation10] sm:$0xff] %v99
    $region25: #{tpu_custom_call.1} parent=1 // pred_fallthru
      _
    // Predicated region
    $region26: #{tpu_custom_call.1} parent=1 // pred_check
      _
    $region27: #{tpu_custom_call.1} parent=1 // pred_check_branch
      %103 = sbr.rel (0) target = $region29
    $region28: #{tpu_custom_call.1} parent=1 // pred_region
      %105 = vsyncadd [#allocation6], 0
      %s107 = sshll.u32 [#allocation9], 4
      %s108 = int_to_ptr.vmem [resolvable:$true] %s107
      %s109 = sshll.u32 %s2, 4
      %s110 = int_to_ptr.hbm [resolvable:$true] %s109
      %112 = dma.vmem_to_hbm [thread:$0]  %s108, 128, %s110, [#allocation6]
    $region29: #{tpu_custom_call.1} parent=1 // pred_fallthru
      _
    // Predicated region
    $region30: #{tpu_custom_call.1} parent=1 // pred_check
      _
    $region31: #{tpu_custom_call.1} parent=1 // pred_check_branch
      %114 = sbr.rel (0) target = $region33
    $region32: #{tpu_custom_call.1} parent=1 // pred_region
      %116 = vsyncadd [#allocation11], 0
      %s118 = sshll.u32 [#allocation10], 4
      %s119 = int_to_ptr.vmem [resolvable:$true] %s118
      %s120 = sshll.u32 %s3, 4
      %s121 = int_to_ptr.hbm [resolvable:$true] %s120
      %123 = dma.vmem_to_hbm [thread:$0]  %s119, 128, %s121, [#allocation11]
    $region33: #{tpu_custom_call.1} parent=1 // pred_fallthru
      _
    // Predicated region
    $region34: #{tpu_custom_call.1} parent=1 // pred_check
      _
    $region35: #{tpu_custom_call.1} parent=1 // pred_check_branch
      %125 = sbr.rel (0) target = $region37
    $region36: #{tpu_custom_call.1} parent=1 // pred_region
      %127 = dma.done [#allocation6], 128
    $region37: #{tpu_custom_call.1} parent=1 // pred_fallthru
      _
    // Predicated region
    $region38: #{tpu_custom_call.1} parent=1 // pred_check
      _
    $region39: #{tpu_custom_call.1} parent=1 // pred_check_branch
      %129 = sbr.rel (0) target = $region41
    $region40: #{tpu_custom_call.1} parent=1 // pred_region
      %131 = dma.done [#allocation11], 128
    $region41: #{tpu_custom_call.1} parent=1 // pred_fallthru
      _
    %132 = vsyncpa [#allocation5], 1
    %133 = vsyncpa [#allocation8], 1
    %134 = vsyncpa [#allocation6], 1
    %135 = vsyncpa [#allocation11], 1

</llo_original>
